<compile_context>
chip_gen: v7x
topology: tpu7x:2x2x1
jax: 0.10.0
libtpu: 0.0.40
codegen_flags: <defaults>
</compile_context>

<pallas_src>
import functools

import jax
import jax.numpy as jnp
from jax import lax
from jax.experimental import pallas as pl
from jax.experimental.pallas import tpu as pltpu

LANE = 128
NEG_SLOPE = 0.01          # PyTorch nn.LeakyReLU default

IN_F = 2
HID_F = 9
OUT_F = 2

CHUNK_ROWS = 64           # inner-loop chunk: keeps live set inside the vreg file
DEFAULT_BLOCK_ROWS = 2048 # rows per grid step: 1 MiB in + 1 MiB out per step
MIN_BLOCK_ROWS = 1024     # once rows >= 2*MIN, force >= 2 grid steps (v7x dual TC)


def _round_up(x, m):
    return ((x + m - 1) // m) * m


def _generator_kernel(z_ref, w1_ref, b1_ref, w2_ref, b2_ref, out_ref, *, block_rows):
    """One (block_rows, 128) slab of the interleaved-lane 2->9->2 MLP.

    z_ref   : VMEM (block_rows, 128) f32 -- flat z, features interleaved on lanes
    w1_ref  : SMEM (18,)  -- row-major (9, 2) PyTorch weight
    b1_ref  : SMEM (9,)
    w2_ref  : SMEM (18,)  -- row-major (2, 9) PyTorch weight
    b2_ref  : SMEM (2,)
    out_ref : VMEM (block_rows, 128) f32 -- flat out, same interleaved layout
    """
    # ---- hoisted, per-grid-step constants (negligible vs per-step work) ----
    # Pair-swap permutation: swap[i, j] = 1.0 iff input lane i is the lane
    # partner of output lane j (j^1).  x @ swap gives every lane the value of
    # its neighbouring lane -- unambiguous, runs on the idle MXU.
    ii = lax.broadcasted_iota(jnp.int32, (LANE, LANE), 0)
    jj = lax.broadcasted_iota(jnp.int32, (LANE, LANE), 1)
    partner = jj + 1 - 2 * (jj % 2)
    swap = (ii == partner).astype(jnp.float32)

    lane = lax.broadcasted_iota(jnp.int32, (CHUNK_ROWS, LANE), 1)
    even = (lane % 2) == 0                      # even lane -> feature 0 of its batch elem

    # Scalar params (SMEM) read once per grid step.
    w1 = [[w1_ref[IN_F * j + k] for k in range(IN_F)] for j in range(HID_F)]
    b1 = [b1_ref[j] for j in range(HID_F)]
    w2 = [[w2_ref[HID_F * o + j] for j in range(HID_F)] for o in range(OUT_F)]
    b2 = [b2_ref[o] for o in range(OUT_F)]

    def chunk_body(c, carry):
        r0 = pl.multiple_of(c * CHUNK_ROWS, CHUNK_ROWS)
        x = z_ref[pl.ds(r0, CHUNK_ROWS), :]                     # (CH, 128)
        p = jnp.dot(x, swap, preferred_element_type=jnp.float32)  # lane-partner values

        # Per lane, (z0, z1) of the batch element that owns this lane.
        z0 = jnp.where(even, x, p)
        z1 = jnp.where(even, p, x)

        # Hidden layer + interleaved output accumulation (no materialized h list).
        acc0 = None
        acc1 = None
        for j in range(HID_F):
            a = w1[j][0] * z0 + w1[j][1] * z1 + b1[j]
            h = jnp.maximum(a, NEG_SLOPE * a)                   # LeakyReLU
            if j == 0:
                acc0 = w2[0][j] * h
                acc1 = w2[1][j] * h
            else:
                acc0 = acc0 + w2[0][j] * h
                acc1 = acc1 + w2[1][j] * h

        # Even lanes carry output feature 0, odd lanes feature 1 (same flat layout).
        out = jnp.where(even, acc0 + b2[0], acc1 + b2[1])
        out_ref[pl.ds(r0, CHUNK_ROWS), :] = out.astype(out_ref.dtype)
        return carry

    lax.fori_loop(0, block_rows // CHUNK_ROWS, chunk_body, 0)


def generator_forward(z, w1, b1, w2, b2):
    """z: (B, 2).  w1: (9, 2), b1: (9,), w2: (2, 9), b2: (2,) (PyTorch layout)."""
    B = z.shape[0]
    assert z.shape[1] == IN_F
    orig_dtype = z.dtype

    # Flat interleaved layout bookkeeping (no transposes anywhere).
    n_elems = IN_F * B
    rows_needed = max(1, -(-n_elems // LANE))
    block_rows = min(DEFAULT_BLOCK_ROWS, _round_up(rows_needed, CHUNK_ROWS))
    if rows_needed >= 2 * MIN_BLOCK_ROWS:
        # Keep at least 2 grid steps so dual-TC chips (v7x) can shard the grid.
        block_rows = min(block_rows, _round_up(-(-rows_needed // 2), CHUNK_ROWS))
    rows_padded = _round_up(rows_needed, block_rows)
    grid = (rows_padded // block_rows,)

    flat = z.astype(jnp.float32).reshape(-1)                    # free, contiguous
    pad = rows_padded * LANE - n_elems
    if pad:
        flat = jnp.pad(flat, (0, pad))
    z2d = flat.reshape(rows_padded, LANE)                       # free, contiguous

    # Flatten params for scalar SMEM reads (PyTorch row-major order kept).
    w1_flat = w1.reshape(-1).astype(jnp.float32)                # (18,)
    b1_flat = b1.reshape(-1).astype(jnp.float32)                # (9,)
    w2_flat = w2.reshape(-1).astype(jnp.float32)                # (18,)
    b2_flat = b2.reshape(-1).astype(jnp.float32)                # (2,)

    smem = pl.BlockSpec(memory_space=pltpu.MemorySpace.SMEM)
    z_spec = pl.BlockSpec((block_rows, LANE), lambda i: (i, 0))
    o_spec = pl.BlockSpec((block_rows, LANE), lambda i: (i, 0))

    out2d = pl.pallas_call(
        functools.partial(_generator_kernel, block_rows=block_rows),
        out_shape=jax.ShapeDtypeStruct((rows_padded, LANE), jnp.float32),
        grid=grid,
        in_specs=[z_spec, smem, smem, smem, smem],
        out_specs=o_spec,
        compiler_params=pltpu.CompilerParams(
            dimension_semantics=("parallel",),
            vmem_limit_bytes=32 * 1024 * 1024,
        ),
    )(z2d, w1_flat, b1_flat, w2_flat, b2_flat)

    out_flat = out2d.reshape(-1)
    if pad:
        out_flat = out_flat[:n_elems]
    return out_flat.reshape(B, OUT_F).astype(orig_dtype)


def init_params(key):
    """Deterministic init mimicking torch.nn.Linear default (Kaiming-uniform-ish)."""
    k1, k2, k3, k4 = jax.random.split(key, 4)
    bound1 = 1.0 / jnp.sqrt(2.0)     # fan_in = 2
    bound2 = 1.0 / jnp.sqrt(9.0)     # fan_in = 9
    w1 = jax.random.uniform(k1, (HID_F, IN_F), jnp.float32, -bound1, bound1)
    b1 = jax.random.uniform(k2, (HID_F,), jnp.float32, -bound1, bound1)
    w2 = jax.random.uniform(k3, (OUT_F, HID_F), jnp.float32, -bound2, bound2)
    b2 = jax.random.uniform(k4, (OUT_F,), jnp.float32, -bound2, bound2)
    return w1, b1, w2, b2


def reference_forward(z, w1, b1, w2, b2):
    h = z @ w1.T + b1
    h = jnp.where(h > 0, h, NEG_SLOPE * h)
    return h @ w2.T + b2


if __name__ == "__main__":
    key = jax.random.PRNGKey(0)
    k_params, k_z1, k_z2 = jax.random.split(key, 3)
    w1, b1, w2, b2 = init_params(k_params)

    # Primary small-shape check (matches the module's forward signature).
    batch = 8
    z = jax.random.normal(k_z1, (batch, IN_F), dtype=jnp.float32)
    out = jax.block_until_ready(generator_forward(z, w1, b1, w2, b2))
    ref = reference_forward(z, w1, b1, w2, b2)
    assert out.shape == (batch, OUT_F)
    assert jnp.allclose(out, ref, atol=1e-5, rtol=1e-5)

    # Secondary check: exercises ragged padding + the multi-chunk inner loop.
    batch2 = 8216
    z2 = jax.random.normal(k_z2, (batch2, IN_F), dtype=jnp.float32)
    out2 = jax.block_until_ready(generator_forward(z2, w1, b1, w2, b2))
    ref2 = reference_forward(z2, w1, b1, w2, b2)
    assert out2.shape == (batch2, OUT_F)
    assert jnp.allclose(out2, ref2, atol=1e-5, rtol=1e-5)

    print("KERNEL_OK")
</pallas_src>

<mosaic_0001>
module attributes {stable_mosaic.version = 11 : i64} {
  func.func @_generator_kernel(%arg0: i32, %arg1: memref<64x128xf32, #tpu.memory_space<vmem>>, %arg2: memref<18xf32, #tpu.memory_space<smem>>, %arg3: memref<9xf32, #tpu.memory_space<smem>>, %arg4: memref<18xf32, #tpu.memory_space<smem>>, %arg5: memref<2xf32, #tpu.memory_space<smem>>, %arg6: memref<64x128xf32, #tpu.memory_space<vmem>>) attributes {dimension_semantics = [#tpu.dimension_semantics<parallel>], iteration_bounds = array<i64: 1>, scalar_prefetch = 0 : i64, scratch_operands = 0 : i64, tpu.core_type = #tpu.core_type<tc>, window_params = [{transform_indices = @transform_0, window_bounds = array<i64: 64, 128>}, {transform_indices = @transform_1, window_bounds = array<i64: 18>}, {transform_indices = @transform_2, window_bounds = array<i64: 9>}, {transform_indices = @transform_3, window_bounds = array<i64: 18>}, {transform_indices = @transform_4, window_bounds = array<i64: 2>}, {transform_indices = @transform_5, window_bounds = array<i64: 64, 128>}]} {
    %0 = tpu.iota {dimensions = array<i32: 0>} : vector<128x128xi32>
    %1 = tpu.iota {dimensions = array<i32: 1>} : vector<128x128xi32>
    %c1_i32 = arith.constant 1 : i32
    %2 = vector.broadcast %c1_i32 : i32 to vector<128x128xi32>
    %3 = arith.addi %1, %2 : vector<128x128xi32>
    %c2_i32 = arith.constant 2 : i32
    %c0_i32 = arith.constant 0 : i32
    %4 = arith.cmpi eq, %c2_i32, %c0_i32 : i32
    %c1_i32_0 = arith.constant 1 : i32
    %5 = arith.select %4, %c1_i32_0, %c2_i32 : i32
    %6 = vector.broadcast %5 : i32 to vector<128x128xi32>
    %7 = arith.remsi %1, %6 : vector<128x128xi32>
    %c0_i32_1 = arith.constant 0 : i32
    %8 = vector.broadcast %c0_i32_1 : i32 to vector<128x128xi32>
    %9 = arith.cmpi ne, %7, %8 : vector<128x128xi32>
    %c0_i32_2 = arith.constant 0 : i32
    %10 = vector.broadcast %c0_i32_2 : i32 to vector<128x128xi32>
    %11 = arith.cmpi slt, %7, %10 : vector<128x128xi32>
    %c0_i32_3 = arith.constant 0 : i32
    %12 = arith.cmpi slt, %5, %c0_i32_3 : i32
    %13 = vector.broadcast %12 : i1 to vector<128x128xi1>
    %14 = vector.broadcast %13 : vector<128x128xi1> to vector<128x128xi1>
    %15 = arith.xori %11, %14 : vector<128x128xi1>
    %16 = arith.andi %15, %9 : vector<128x128xi1>
    %17 = vector.broadcast %5 : i32 to vector<128x128xi32>
    %18 = arith.addi %7, %17 : vector<128x128xi32>
    %19 = arith.select %16, %18, %7 : vector<128x128xi1>, vector<128x128xi32>
    %c2_i32_4 = arith.constant 2 : i32
    %20 = vector.broadcast %c2_i32_4 : i32 to vector<128x128xi32>
    %21 = arith.muli %20, %19 : vector<128x128xi32>
    %22 = arith.subi %3, %21 : vector<128x128xi32>
    %23 = arith.cmpi eq, %0, %22 : vector<128x128xi32>
    %24 = arith.extui %23 : vector<128x128xi1> to vector<128x128xi32>
    %25 = arith.sitofp %24 : vector<128x128xi32> to vector<128x128xf32>
    %26 = tpu.iota {dimensions = array<i32: 1>} : vector<64x128xi32>
    %c2_i32_5 = arith.constant 2 : i32
    %c0_i32_6 = arith.constant 0 : i32
    %27 = arith.cmpi eq, %c2_i32_5, %c0_i32_6 : i32
    %c1_i32_7 = arith.constant 1 : i32
    %28 = arith.select %27, %c1_i32_7, %c2_i32_5 : i32
    %29 = vector.broadcast %28 : i32 to vector<64x128xi32>
    %30 = arith.remsi %26, %29 : vector<64x128xi32>
    %c0_i32_8 = arith.constant 0 : i32
    %31 = vector.broadcast %c0_i32_8 : i32 to vector<64x128xi32>
    %32 = arith.cmpi ne, %30, %31 : vector<64x128xi32>
    %c0_i32_9 = arith.constant 0 : i32
    %33 = vector.broadcast %c0_i32_9 : i32 to vector<64x128xi32>
    %34 = arith.cmpi slt, %30, %33 : vector<64x128xi32>
    %c0_i32_10 = arith.constant 0 : i32
    %35 = arith.cmpi slt, %28, %c0_i32_10 : i32
    %36 = vector.broadcast %35 : i1 to vector<64x128xi1>
    %37 = vector.broadcast %36 : vector<64x128xi1> to vector<64x128xi1>
    %38 = arith.xori %34, %37 : vector<64x128xi1>
    %39 = arith.andi %38, %32 : vector<64x128xi1>
    %40 = vector.broadcast %28 : i32 to vector<64x128xi32>
    %41 = arith.addi %30, %40 : vector<64x128xi32>
    %42 = arith.select %39, %41, %30 : vector<64x128xi1>, vector<64x128xi32>
    %c0_i32_11 = arith.constant 0 : i32
    %43 = vector.broadcast %c0_i32_11 : i32 to vector<64x128xi32>
    %44 = arith.cmpi eq, %42, %43 : vector<64x128xi32>
    %c0 = arith.constant 0 : index
    %45 = memref.load %arg2[%c0] : memref<18xf32, #tpu.memory_space<smem>>
    %c1 = arith.constant 1 : index
    %46 = memref.load %arg2[%c1] : memref<18xf32, #tpu.memory_space<smem>>
    %c2 = arith.constant 2 : index
    %47 = memref.load %arg2[%c2] : memref<18xf32, #tpu.memory_space<smem>>
    %c3 = arith.constant 3 : index
    %48 = memref.load %arg2[%c3] : memref<18xf32, #tpu.memory_space<smem>>
    %c4 = arith.constant 4 : index
    %49 = memref.load %arg2[%c4] : memref<18xf32, #tpu.memory_space<smem>>
    %c5 = arith.constant 5 : index
    %50 = memref.load %arg2[%c5] : memref<18xf32, #tpu.memory_space<smem>>
    %c6 = arith.constant 6 : index
    %51 = memref.load %arg2[%c6] : memref<18xf32, #tpu.memory_space<smem>>
    %c7 = arith.constant 7 : index
    %52 = memref.load %arg2[%c7] : memref<18xf32, #tpu.memory_space<smem>>
    %c8 = arith.constant 8 : index
    %53 = memref.load %arg2[%c8] : memref<18xf32, #tpu.memory_space<smem>>
    %c9 = arith.constant 9 : index
    %54 = memref.load %arg2[%c9] : memref<18xf32, #tpu.memory_space<smem>>
    %c10 = arith.constant 10 : index
    %55 = memref.load %arg2[%c10] : memref<18xf32, #tpu.memory_space<smem>>
    %c11 = arith.constant 11 : index
    %56 = memref.load %arg2[%c11] : memref<18xf32, #tpu.memory_space<smem>>
    %c12 = arith.constant 12 : index
    %57 = memref.load %arg2[%c12] : memref<18xf32, #tpu.memory_space<smem>>
    %c13 = arith.constant 13 : index
    %58 = memref.load %arg2[%c13] : memref<18xf32, #tpu.memory_space<smem>>
    %c14 = arith.constant 14 : index
    %59 = memref.load %arg2[%c14] : memref<18xf32, #tpu.memory_space<smem>>
    %c15 = arith.constant 15 : index
    %60 = memref.load %arg2[%c15] : memref<18xf32, #tpu.memory_space<smem>>
    %c16 = arith.constant 16 : index
    %61 = memref.load %arg2[%c16] : memref<18xf32, #tpu.memory_space<smem>>
    %c17 = arith.constant 17 : index
    %62 = memref.load %arg2[%c17] : memref<18xf32, #tpu.memory_space<smem>>
    %c0_12 = arith.constant 0 : index
    %63 = memref.load %arg3[%c0_12] : memref<9xf32, #tpu.memory_space<smem>>
    %c1_13 = arith.constant 1 : index
    %64 = memref.load %arg3[%c1_13] : memref<9xf32, #tpu.memory_space<smem>>
    %c2_14 = arith.constant 2 : index
    %65 = memref.load %arg3[%c2_14] : memref<9xf32, #tpu.memory_space<smem>>
    %c3_15 = arith.constant 3 : index
    %66 = memref.load %arg3[%c3_15] : memref<9xf32, #tpu.memory_space<smem>>
    %c4_16 = arith.constant 4 : index
    %67 = memref.load %arg3[%c4_16] : memref<9xf32, #tpu.memory_space<smem>>
    %c5_17 = arith.constant 5 : index
    %68 = memref.load %arg3[%c5_17] : memref<9xf32, #tpu.memory_space<smem>>
    %c6_18 = arith.constant 6 : index
    %69 = memref.load %arg3[%c6_18] : memref<9xf32, #tpu.memory_space<smem>>
    %c7_19 = arith.constant 7 : index
    %70 = memref.load %arg3[%c7_19] : memref<9xf32, #tpu.memory_space<smem>>
    %c8_20 = arith.constant 8 : index
    %71 = memref.load %arg3[%c8_20] : memref<9xf32, #tpu.memory_space<smem>>
    %c0_21 = arith.constant 0 : index
    %72 = memref.load %arg4[%c0_21] : memref<18xf32, #tpu.memory_space<smem>>
    %c1_22 = arith.constant 1 : index
    %73 = memref.load %arg4[%c1_22] : memref<18xf32, #tpu.memory_space<smem>>
    %c2_23 = arith.constant 2 : index
    %74 = memref.load %arg4[%c2_23] : memref<18xf32, #tpu.memory_space<smem>>
    %c3_24 = arith.constant 3 : index
    %75 = memref.load %arg4[%c3_24] : memref<18xf32, #tpu.memory_space<smem>>
    %c4_25 = arith.constant 4 : index
    %76 = memref.load %arg4[%c4_25] : memref<18xf32, #tpu.memory_space<smem>>
    %c5_26 = arith.constant 5 : index
    %77 = memref.load %arg4[%c5_26] : memref<18xf32, #tpu.memory_space<smem>>
    %c6_27 = arith.constant 6 : index
    %78 = memref.load %arg4[%c6_27] : memref<18xf32, #tpu.memory_space<smem>>
    %c7_28 = arith.constant 7 : index
    %79 = memref.load %arg4[%c7_28] : memref<18xf32, #tpu.memory_space<smem>>
    %c8_29 = arith.constant 8 : index
    %80 = memref.load %arg4[%c8_29] : memref<18xf32, #tpu.memory_space<smem>>
    %c9_30 = arith.constant 9 : index
    %81 = memref.load %arg4[%c9_30] : memref<18xf32, #tpu.memory_space<smem>>
    %c10_31 = arith.constant 10 : index
    %82 = memref.load %arg4[%c10_31] : memref<18xf32, #tpu.memory_space<smem>>
    %c11_32 = arith.constant 11 : index
    %83 = memref.load %arg4[%c11_32] : memref<18xf32, #tpu.memory_space<smem>>
    %c12_33 = arith.constant 12 : index
    %84 = memref.load %arg4[%c12_33] : memref<18xf32, #tpu.memory_space<smem>>
    %c13_34 = arith.constant 13 : index
    %85 = memref.load %arg4[%c13_34] : memref<18xf32, #tpu.memory_space<smem>>
    %c14_35 = arith.constant 14 : index
    %86 = memref.load %arg4[%c14_35] : memref<18xf32, #tpu.memory_space<smem>>
    %c15_36 = arith.constant 15 : index
    %87 = memref.load %arg4[%c15_36] : memref<18xf32, #tpu.memory_space<smem>>
    %c16_37 = arith.constant 16 : index
    %88 = memref.load %arg4[%c16_37] : memref<18xf32, #tpu.memory_space<smem>>
    %c17_38 = arith.constant 17 : index
    %89 = memref.load %arg4[%c17_38] : memref<18xf32, #tpu.memory_space<smem>>
    %c0_39 = arith.constant 0 : index
    %90 = memref.load %arg5[%c0_39] : memref<2xf32, #tpu.memory_space<smem>>
    %c1_40 = arith.constant 1 : index
    %91 = memref.load %arg5[%c1_40] : memref<2xf32, #tpu.memory_space<smem>>
    %c0_i32_41 = arith.constant 0 : i32
    %c64_i32 = arith.constant 64 : i32
    %92 = arith.muli %c0_i32_41, %c64_i32 : i32
    %93 = tpu.assume_multiple %92, 64 : i32
    %94 = arith.index_cast %93 : i32 to index
    %c0_42 = arith.constant 0 : index
    %95 = vector.load %arg1[%94, %c0_42] : memref<64x128xf32, #tpu.memory_space<vmem>>, vector<64x128xf32>
    %cst = arith.constant dense<0.000000e+00> : vector<64x128xf32>
    %96 = tpu.matmul %95, %25, %cst {dimension_numbers = #tpu.dot_dimension_numbers<[1], [0], [0], [1], [0, 0, 1, 1], [], []>} : vector<64x128xf32>, vector<128x128xf32>, vector<64x128xf32> -> vector<64x128xf32>
    %97 = arith.select %44, %95, %96 : vector<64x128xi1>, vector<64x128xf32>
    %98 = arith.select %44, %96, %95 : vector<64x128xi1>, vector<64x128xf32>
    %99 = vector.broadcast %45 : f32 to vector<64x128xf32>
    %100 = arith.mulf %99, %97 : vector<64x128xf32>
    %101 = vector.broadcast %46 : f32 to vector<64x128xf32>
    %102 = arith.mulf %101, %98 : vector<64x128xf32>
    %103 = arith.addf %100, %102 : vector<64x128xf32>
    %104 = vector.broadcast %63 : f32 to vector<64x128xf32>
    %105 = arith.addf %103, %104 : vector<64x128xf32>
    %cst_43 = arith.constant 0.00999999977 : f32
    %106 = vector.broadcast %cst_43 : f32 to vector<64x128xf32>
    %107 = arith.mulf %106, %105 : vector<64x128xf32>
    %108 = arith.maximumf %105, %107 : vector<64x128xf32>
    %109 = vector.broadcast %72 : f32 to vector<64x128xf32>
    %110 = arith.mulf %109, %108 : vector<64x128xf32>
    %111 = vector.broadcast %81 : f32 to vector<64x128xf32>
    %112 = arith.mulf %111, %108 : vector<64x128xf32>
    %113 = vector.broadcast %47 : f32 to vector<64x128xf32>
    %114 = arith.mulf %113, %97 : vector<64x128xf32>
    %115 = vector.broadcast %48 : f32 to vector<64x128xf32>
    %116 = arith.mulf %115, %98 : vector<64x128xf32>
    %117 = arith.addf %114, %116 : vector<64x128xf32>
    %118 = vector.broadcast %64 : f32 to vector<64x128xf32>
    %119 = arith.addf %117, %118 : vector<64x128xf32>
    %cst_44 = arith.constant 0.00999999977 : f32
    %120 = vector.broadcast %cst_44 : f32 to vector<64x128xf32>
    %121 = arith.mulf %120, %119 : vector<64x128xf32>
    %122 = arith.maximumf %119, %121 : vector<64x128xf32>
    %123 = vector.broadcast %73 : f32 to vector<64x128xf32>
    %124 = arith.mulf %123, %122 : vector<64x128xf32>
    %125 = arith.addf %110, %124 : vector<64x128xf32>
    %126 = vector.broadcast %82 : f32 to vector<64x128xf32>
    %127 = arith.mulf %126, %122 : vector<64x128xf32>
    %128 = arith.addf %112, %127 : vector<64x128xf32>
    %129 = vector.broadcast %49 : f32 to vector<64x128xf32>
    %130 = arith.mulf %129, %97 : vector<64x128xf32>
    %131 = vector.broadcast %50 : f32 to vector<64x128xf32>
    %132 = arith.mulf %131, %98 : vector<64x128xf32>
    %133 = arith.addf %130, %132 : vector<64x128xf32>
    %134 = vector.broadcast %65 : f32 to vector<64x128xf32>
    %135 = arith.addf %133, %134 : vector<64x128xf32>
    %cst_45 = arith.constant 0.00999999977 : f32
    %136 = vector.broadcast %cst_45 : f32 to vector<64x128xf32>
    %137 = arith.mulf %136, %135 : vector<64x128xf32>
    %138 = arith.maximumf %135, %137 : vector<64x128xf32>
    %139 = vector.broadcast %74 : f32 to vector<64x128xf32>
    %140 = arith.mulf %139, %138 : vector<64x128xf32>
    %141 = arith.addf %125, %140 : vector<64x128xf32>
    %142 = vector.broadcast %83 : f32 to vector<64x128xf32>
    %143 = arith.mulf %142, %138 : vector<64x128xf32>
    %144 = arith.addf %128, %143 : vector<64x128xf32>
    %145 = vector.broadcast %51 : f32 to vector<64x128xf32>
    %146 = arith.mulf %145, %97 : vector<64x128xf32>
    %147 = vector.broadcast %52 : f32 to vector<64x128xf32>
    %148 = arith.mulf %147, %98 : vector<64x128xf32>
    %149 = arith.addf %146, %148 : vector<64x128xf32>
    %150 = vector.broadcast %66 : f32 to vector<64x128xf32>
    %151 = arith.addf %149, %150 : vector<64x128xf32>
    %cst_46 = arith.constant 0.00999999977 : f32
    %152 = vector.broadcast %cst_46 : f32 to vector<64x128xf32>
    %153 = arith.mulf %152, %151 : vector<64x128xf32>
    %154 = arith.maximumf %151, %153 : vector<64x128xf32>
    %155 = vector.broadcast %75 : f32 to vector<64x128xf32>
    %156 = arith.mulf %155, %154 : vector<64x128xf32>
    %157 = arith.addf %141, %156 : vector<64x128xf32>
    %158 = vector.broadcast %84 : f32 to vector<64x128xf32>
    %159 = arith.mulf %158, %154 : vector<64x128xf32>
    %160 = arith.addf %144, %159 : vector<64x128xf32>
    %161 = vector.broadcast %53 : f32 to vector<64x128xf32>
    %162 = arith.mulf %161, %97 : vector<64x128xf32>
    %163 = vector.broadcast %54 : f32 to vector<64x128xf32>
    %164 = arith.mulf %163, %98 : vector<64x128xf32>
    %165 = arith.addf %162, %164 : vector<64x128xf32>
    %166 = vector.broadcast %67 : f32 to vector<64x128xf32>
    %167 = arith.addf %165, %166 : vector<64x128xf32>
    %cst_47 = arith.constant 0.00999999977 : f32
    %168 = vector.broadcast %cst_47 : f32 to vector<64x128xf32>
    %169 = arith.mulf %168, %167 : vector<64x128xf32>
    %170 = arith.maximumf %167, %169 : vector<64x128xf32>
    %171 = vector.broadcast %76 : f32 to vector<64x128xf32>
    %172 = arith.mulf %171, %170 : vector<64x128xf32>
    %173 = arith.addf %157, %172 : vector<64x128xf32>
    %174 = vector.broadcast %85 : f32 to vector<64x128xf32>
    %175 = arith.mulf %174, %170 : vector<64x128xf32>
    %176 = arith.addf %160, %175 : vector<64x128xf32>
    %177 = vector.broadcast %55 : f32 to vector<64x128xf32>
    %178 = arith.mulf %177, %97 : vector<64x128xf32>
    %179 = vector.broadcast %56 : f32 to vector<64x128xf32>
    %180 = arith.mulf %179, %98 : vector<64x128xf32>
    %181 = arith.addf %178, %180 : vector<64x128xf32>
    %182 = vector.broadcast %68 : f32 to vector<64x128xf32>
    %183 = arith.addf %181, %182 : vector<64x128xf32>
    %cst_48 = arith.constant 0.00999999977 : f32
    %184 = vector.broadcast %cst_48 : f32 to vector<64x128xf32>
    %185 = arith.mulf %184, %183 : vector<64x128xf32>
    %186 = arith.maximumf %183, %185 : vector<64x128xf32>
    %187 = vector.broadcast %77 : f32 to vector<64x128xf32>
    %188 = arith.mulf %187, %186 : vector<64x128xf32>
    %189 = arith.addf %173, %188 : vector<64x128xf32>
    %190 = vector.broadcast %86 : f32 to vector<64x128xf32>
    %191 = arith.mulf %190, %186 : vector<64x128xf32>
    %192 = arith.addf %176, %191 : vector<64x128xf32>
    %193 = vector.broadcast %57 : f32 to vector<64x128xf32>
    %194 = arith.mulf %193, %97 : vector<64x128xf32>
    %195 = vector.broadcast %58 : f32 to vector<64x128xf32>
    %196 = arith.mulf %195, %98 : vector<64x128xf32>
    %197 = arith.addf %194, %196 : vector<64x128xf32>
    %198 = vector.broadcast %69 : f32 to vector<64x128xf32>
    %199 = arith.addf %197, %198 : vector<64x128xf32>
    %cst_49 = arith.constant 0.00999999977 : f32
    %200 = vector.broadcast %cst_49 : f32 to vector<64x128xf32>
    %201 = arith.mulf %200, %199 : vector<64x128xf32>
    %202 = arith.maximumf %199, %201 : vector<64x128xf32>
    %203 = vector.broadcast %78 : f32 to vector<64x128xf32>
    %204 = arith.mulf %203, %202 : vector<64x128xf32>
    %205 = arith.addf %189, %204 : vector<64x128xf32>
    %206 = vector.broadcast %87 : f32 to vector<64x128xf32>
    %207 = arith.mulf %206, %202 : vector<64x128xf32>
    %208 = arith.addf %192, %207 : vector<64x128xf32>
    %209 = vector.broadcast %59 : f32 to vector<64x128xf32>
    %210 = arith.mulf %209, %97 : vector<64x128xf32>
    %211 = vector.broadcast %60 : f32 to vector<64x128xf32>
    %212 = arith.mulf %211, %98 : vector<64x128xf32>
    %213 = arith.addf %210, %212 : vector<64x128xf32>
    %214 = vector.broadcast %70 : f32 to vector<64x128xf32>
    %215 = arith.addf %213, %214 : vector<64x128xf32>
    %cst_50 = arith.constant 0.00999999977 : f32
    %216 = vector.broadcast %cst_50 : f32 to vector<64x128xf32>
    %217 = arith.mulf %216, %215 : vector<64x128xf32>
    %218 = arith.maximumf %215, %217 : vector<64x128xf32>
    %219 = vector.broadcast %79 : f32 to vector<64x128xf32>
    %220 = arith.mulf %219, %218 : vector<64x128xf32>
    %221 = arith.addf %205, %220 : vector<64x128xf32>
    %222 = vector.broadcast %88 : f32 to vector<64x128xf32>
    %223 = arith.mulf %222, %218 : vector<64x128xf32>
    %224 = arith.addf %208, %223 : vector<64x128xf32>
    %225 = vector.broadcast %61 : f32 to vector<64x128xf32>
    %226 = arith.mulf %225, %97 : vector<64x128xf32>
    %227 = vector.broadcast %62 : f32 to vector<64x128xf32>
    %228 = arith.mulf %227, %98 : vector<64x128xf32>
    %229 = arith.addf %226, %228 : vector<64x128xf32>
    %230 = vector.broadcast %71 : f32 to vector<64x128xf32>
    %231 = arith.addf %229, %230 : vector<64x128xf32>
    %cst_51 = arith.constant 0.00999999977 : f32
    %232 = vector.broadcast %cst_51 : f32 to vector<64x128xf32>
    %233 = arith.mulf %232, %231 : vector<64x128xf32>
    %234 = arith.maximumf %231, %233 : vector<64x128xf32>
    %235 = vector.broadcast %80 : f32 to vector<64x128xf32>
    %236 = arith.mulf %235, %234 : vector<64x128xf32>
    %237 = arith.addf %221, %236 : vector<64x128xf32>
    %238 = vector.broadcast %89 : f32 to vector<64x128xf32>
    %239 = arith.mulf %238, %234 : vector<64x128xf32>
    %240 = arith.addf %224, %239 : vector<64x128xf32>
    %241 = vector.broadcast %90 : f32 to vector<64x128xf32>
    %242 = arith.addf %237, %241 : vector<64x128xf32>
    %243 = vector.broadcast %91 : f32 to vector<64x128xf32>
    %244 = arith.addf %240, %243 : vector<64x128xf32>
    %245 = arith.select %44, %242, %244 : vector<64x128xi1>, vector<64x128xf32>
    %246 = arith.index_cast %93 : i32 to index
    %c0_52 = arith.constant 0 : index
    %247 = vector.load %arg6[%246, %c0_52] : memref<64x128xf32, #tpu.memory_space<vmem>>, vector<64x128xf32>
    tpu.vector_store %arg6[%246, %c0_52], %245 {strides = array<i32>} : memref<64x128xf32, #tpu.memory_space<vmem>>, vector<64x128xf32>,
    %c1_i32_53 = arith.constant 1 : i32
    return
  }
  func.func @transform_0(%arg0: i32) -> (i32, i32) {
    %c0_i32 = arith.constant 0 : i32
    %c0_i32_0 = arith.constant 0 : i32
    return %arg0, %c0_i32 : i32, i32
  }
  func.func @transform_1(%arg0: i32) -> i32 {
    %c0_i32 = arith.constant 0 : i32
    %c0_i32_0 = arith.constant 0 : i32
    return %c0_i32 : i32
  }
  func.func @transform_2(%arg0: i32) -> i32 {
    %c0_i32 = arith.constant 0 : i32
    %c0_i32_0 = arith.constant 0 : i32
    return %c0_i32 : i32
  }
  func.func @transform_3(%arg0: i32) -> i32 {
    %c0_i32 = arith.constant 0 : i32
    %c0_i32_0 = arith.constant 0 : i32
    return %c0_i32 : i32
  }
  func.func @transform_4(%arg0: i32) -> i32 {
    %c0_i32 = arith.constant 0 : i32
    %c0_i32_0 = arith.constant 0 : i32
    return %c0_i32 : i32
  }
  func.func @transform_5(%arg0: i32) -> (i32, i32) {
    %c0_i32 = arith.constant 0 : i32
    %c0_i32_0 = arith.constant 0 : i32
    return %arg0, %c0_i32 : i32, i32
  }
}

</mosaic_0001>

<llo_original>
// kernel: tpu_custom_call.1
$region0: #{tpu_custom_call.1}
  #allocation0 [shape = 'u32[]', space=smem, size = 0x4, offset = 0x4, fixed_abs, tag = 'smem constant byte address 0x4 - core index']
  #allocation1 [shape = 'u32[144,128]{1,0:T(1,128)}', space=vmem, size = 0x12000, scoped, tag = 'internal scratch']
  %s0 = inlined_call_operand.hbm [shape: f32[64,128], index: 0, kind: input, shape index: {}]
  %s1 = inlined_call_operand.vmem [shape: f32[18], index: 1, kind: input, shape index: {}]
  %s2 = inlined_call_operand.vmem [shape: f32[9], index: 2, kind: input, shape index: {}]
  %s3 = inlined_call_operand.vmem [shape: f32[18], index: 3, kind: input, shape index: {}]
  %s4 = inlined_call_operand.vmem [shape: f32[2], index: 4, kind: input, shape index: {}]
  %s5 = inlined_call_operand.hbm [shape: f32[64,128], index: 5, kind: output, shape index: {}]
  %s6 = sld [smem:[#allocation0]]
  $region50: #{tpu_custom_call.1} parent=0
    _
  %s8 = ssub.s32 1, %s6
  %s9 = scalar_select 0, %s8, %s6
  $region1: #{tpu_custom_call.1} parent=0
    #allocation2 [shape = 'u8[32768]{0}', space=vmem, size = 0x8000, scoped, tag = 'input window, operand 0, single buffered']
    #allocation3 [shape = 's32[1]{0}', space=sflag, size = 0x4, scoped, tag = 'scoped memory for tpu_custom_call.1']
    #allocation4 [shape = 's32[1]{0}', space=sflag, size = 0x4, scoped, tag = 'scoped memory for tpu_custom_call.1']
    #allocation5 [shape = 's32[1]{0}', space=sflag, size = 0x4, scoped, tag = 'scoped memory for tpu_custom_call.1']
    #allocation6 [shape = 'u8[512]{0}', space=smem, size = 0x200, scoped, tag = 'input window, operand 1, single buffered']
    #allocation7 [shape = 'u8[512]{0}', space=smem, size = 0x200, scoped, tag = 'input window, operand 2, single buffered']
    #allocation8 [shape = 's32[1]{0}', space=sflag, size = 0x4, scoped, tag = 'scoped memory for tpu_custom_call.1']
    #allocation9 [shape = 'u8[512]{0}', space=smem, size = 0x200, scoped, tag = 'input window, operand 3, single buffered']
    #allocation10 [shape = 'u8[512]{0}', space=smem, size = 0x200, scoped, tag = 'input window, operand 4, single buffered']
    #allocation11 [shape = 's32[1]{0}', space=sflag, size = 0x4, scoped, tag = 'scoped memory for tpu_custom_call.1']
    #allocation12 [shape = 'u8[32768]{0}', space=vmem, size = 0x8000, scoped, tag = 'output window, operand 0, single buffered']
    %10 = vsyncpa [#allocation3], 0
    %11 = vsyncpa [#allocation5], 0
    %12 = vsyncpa [#allocation8], 0
    %13 = vsyncpa [#allocation11], 0
    %14 = vsyncpa [#allocation4], 0
    // Predicated region
    $region2: #{tpu_custom_call.1} parent=1 // pred_check
      _
    $region3: #{tpu_custom_call.1} parent=1 // pred_check_branch
      %16 = sbr.rel (0) target = $region5
    $region4: #{tpu_custom_call.1} parent=1 // pred_region
      %s18 = ssub.s32 1024, 1024
      %19 = vsyncadd [#allocation3], %s18
      %s20 = sshll.u32 [#allocation2], 4
      %s21 = int_to_ptr.vmem [resolvable:$true] %s20
      %26 = dma.hbm_to_vmem [thread:$0]  %s0, 1024, %s21, [#allocation3], 128, 128, 8
    $region5: #{tpu_custom_call.1} parent=1 // pred_fallthru
      _
    // Predicated region
    $region6: #{tpu_custom_call.1} parent=1 // pred_check
      _
    $region7: #{tpu_custom_call.1} parent=1 // pred_check_branch
      %28 = sbr.rel (0) target = $region9
    $region8: #{tpu_custom_call.1} parent=1 // pred_region
      %s30 = ssub.s32 16, 16
      %31 = vsyncadd [#allocation5], %s30
      %s33 = sshll.u32 %s1, 4
      %s34 = int_to_ptr.vmem [resolvable:$true] %s33
      %36 = dma.vmem_to_smem %s34, 16, [#allocation6], [#allocation5]
    $region9: #{tpu_custom_call.1} parent=1 // pred_fallthru
      _
    // Predicated region
    $region10: #{tpu_custom_call.1} parent=1 // pred_check
      _
    $region11: #{tpu_custom_call.1} parent=1 // pred_check_branch
      %38 = sbr.rel (0) target = $region13
    $region12: #{tpu_custom_call.1} parent=1 // pred_region
      %s40 = ssub.s32 16, 16
      %41 = vsyncadd [#allocation8], %s40
      %s43 = sshll.u32 %s2, 4
      %s44 = int_to_ptr.vmem [resolvable:$true] %s43
      %46 = dma.vmem_to_smem %s44, 16, [#allocation7], [#allocation8]
    $region13: #{tpu_custom_call.1} parent=1 // pred_fallthru
      _
    // Predicated region
    $region14: #{tpu_custom_call.1} parent=1 // pred_check
      _
    $region15: #{tpu_custom_call.1} parent=1 // pred_check_branch
      %48 = sbr.rel (0) target = $region17
    $region16: #{tpu_custom_call.1} parent=1 // pred_region
      %s50 = ssub.s32 16, 16
      %51 = vsyncadd [#allocation8], %s50
      %s53 = sshll.u32 %s3, 4
      %s54 = int_to_ptr.vmem [resolvable:$true] %s53
      %56 = dma.vmem_to_smem %s54, 16, [#allocation9], [#allocation8]
    $region17: #{tpu_custom_call.1} parent=1 // pred_fallthru
      _
    // Predicated region
    $region18: #{tpu_custom_call.1} parent=1 // pred_check
      _
    $region19: #{tpu_custom_call.1} parent=1 // pred_check_branch
      %58 = sbr.rel (0) target = $region21
    $region20: #{tpu_custom_call.1} parent=1 // pred_region
      %s60 = ssub.s32 16, 16
      %61 = vsyncadd [#allocation11], %s60
      %s63 = sshll.u32 %s4, 4
      %s64 = int_to_ptr.vmem [resolvable:$true] %s63
      %66 = dma.vmem_to_smem %s64, 16, [#allocation10], [#allocation11]
    $region21: #{tpu_custom_call.1} parent=1 // pred_fallthru
      _
    // Predicated region
    $region22: #{tpu_custom_call.1} parent=1 // pred_check
      _
    $region23: #{tpu_custom_call.1} parent=1 // pred_check_branch
      %68 = sbr.rel (0) target = $region25
    $region24: #{tpu_custom_call.1} parent=1 // pred_region
      %69 = dma.done [#allocation3], 1024
    $region25: #{tpu_custom_call.1} parent=1 // pred_fallthru
      _
    // Predicated region
    $region26: #{tpu_custom_call.1} parent=1 // pred_check
      _
    $region27: #{tpu_custom_call.1} parent=1 // pred_check_branch
      %71 = sbr.rel (0) target = $region29
    $region28: #{tpu_custom_call.1} parent=1 // pred_region
      %72 = dma.done [#allocation5], 16
    $region29: #{tpu_custom_call.1} parent=1 // pred_fallthru
      _
    // Predicated region
    $region30: #{tpu_custom_call.1} parent=1 // pred_check
      _
    $region31: #{tpu_custom_call.1} parent=1 // pred_check_branch
      %74 = sbr.rel (0) target = $region33
    $region32: #{tpu_custom_call.1} parent=1 // pred_region
      %75 = dma.done [#allocation8], 16
    $region33: #{tpu_custom_call.1} parent=1 // pred_fallthru
      _
    // Predicated region
    $region34: #{tpu_custom_call.1} parent=1 // pred_check
      _
    $region35: #{tpu_custom_call.1} parent=1 // pred_check_branch
      %77 = sbr.rel (0) target = $region37
    $region36: #{tpu_custom_call.1} parent=1 // pred_region
      %78 = dma.done [#allocation8], 16
    $region37: #{tpu_custom_call.1} parent=1 // pred_fallthru
      _
    // Predicated region
    $region38: #{tpu_custom_call.1} parent=1 // pred_check
      _
    $region39: #{tpu_custom_call.1} parent=1 // pred_check_branch
      %80 = sbr.rel (0) target = $region41
    $region40: #{tpu_custom_call.1} parent=1 // pred_region
      %81 = dma.done [#allocation11], 16
    $region41: #{tpu_custom_call.1} parent=1 // pred_fallthru
      _
    %82 = sfence
    %v83 = vlaneseq
    %v84 = vshrl.u32 %v83, 7
    %v85 = vadd.s32 %v84, 8
    %v86 = vadd.s32 %v84, 16
    %v87 = vadd.s32 %v84, 24
    %v88 = vadd.s32 %v84, 32
    %v89 = vadd.s32 %v84, 40
    %v90 = vadd.s32 %v84, 48
    %v91 = vadd.s32 %v84, 56
    %v92 = vadd.s32 %v84, 64
    %v93 = vadd.s32 %v84, 72
    %v94 = vadd.s32 %v84, 80
    %v95 = vadd.s32 %v84, 88
    %v96 = vadd.s32 %v84, 96
    %v97 = vadd.s32 %v84, 104
    %v98 = vadd.s32 %v84, 112
    %v99 = vadd.s32 %v84, 120
    %v100 = vlaneseq
    %v101 = vand.u32 %v100, 127
    %v102 = vadd.s32 %v101, 1
    %vm103 = vcmp.lt.s32.totalorder %v101, 0
    %v104 = vsub.s32 0, %v101
    %v105 = vsel %vm103, %v104, %v101
    %v106 = vshrl.u32 %v105, 1
    %v107 = vand.u32 %v105, 1
    %v108 = vsub.s32 0, %v107
    %v109 = vsel %vm103, %v108, %v107
    %vm110 = vcmp.ne.s32.totalorder %v109, 0
    %vm111 = vcmp.lt.s32.totalorder %v109, 0
    %vm112 = vmand %vm111, %vm110
    %v113 = vadd.s32 %v109, 2
    %v114 = vsel %vm112, %v113, %v109
    %v115 = vmul.u32 %v114, 2
    %v116 = vsub.s32 %v102, %v115
    %vm117 = vcmp.eq.s32.totalorder %v84, %v116
    %vm118 = vcmp.eq.s32.totalorder %v85, %v116
    %vm119 = vcmp.eq.s32.totalorder %v86, %v116
    %vm120 = vcmp.eq.s32.totalorder %v87, %v116
    %vm121 = vcmp.eq.s32.totalorder %v88, %v116
    %vm122 = vcmp.eq.s32.totalorder %v89, %v116
    %vm123 = vcmp.eq.s32.totalorder %v90, %v116
    %vm124 = vcmp.eq.s32.totalorder %v91, %v116
    %vm125 = vcmp.eq.s32.totalorder %v92, %v116
    %vm126 = vcmp.eq.s32.totalorder %v93, %v116
    %vm127 = vcmp.eq.s32.totalorder %v94, %v116
    %vm128 = vcmp.eq.s32.totalorder %v95, %v116
    %vm129 = vcmp.eq.s32.totalorder %v96, %v116
    %vm130 = vcmp.eq.s32.totalorder %v97, %v116
    %vm131 = vcmp.eq.s32.totalorder %v98, %v116
    %vm132 = vcmp.eq.s32.totalorder %v99, %v116
    %v133 = vsel %vm117, 1, 0
    %v134 = vsel %vm118, 1, 0
    %v135 = vsel %vm119, 1, 0
    %v136 = vsel %vm120, 1, 0
    %v137 = vsel %vm121, 1, 0
    %v138 = vsel %vm122, 1, 0
    %v139 = vsel %vm123, 1, 0
    %v140 = vsel %vm124, 1, 0
    %v141 = vsel %vm125, 1, 0
    %v142 = vsel %vm126, 1, 0
    %v143 = vsel %vm127, 1, 0
    %v144 = vsel %vm128, 1, 0
    %v145 = vsel %vm129, 1, 0
    %v146 = vsel %vm130, 1, 0
    %v147 = vsel %vm131, 1, 0
    %v148 = vsel %vm132, 1, 0
    %v149 = vcvt.s32.f32 %v133
    %v150 = vcvt.s32.f32 %v134
    %v151 = vcvt.s32.f32 %v135
    %v152 = vcvt.s32.f32 %v136
    %v153 = vcvt.s32.f32 %v137
    %v154 = vcvt.s32.f32 %v138
    %v155 = vcvt.s32.f32 %v139
    %v156 = vcvt.s32.f32 %v140
    %v157 = vcvt.s32.f32 %v141
    %v158 = vcvt.s32.f32 %v142
    %v159 = vcvt.s32.f32 %v143
    %v160 = vcvt.s32.f32 %v144
    %v161 = vcvt.s32.f32 %v145
    %v162 = vcvt.s32.f32 %v146
    %v163 = vcvt.s32.f32 %v147
    %v164 = vcvt.s32.f32 %v148
    %vm165 = vcmp.eq.s32.totalorder %v114, 0
    %s166 = sld [smem:[#allocation6]]
    %s167 = sld [smem:[#allocation6 + $0x1]]
    %s168 = sld [smem:[#allocation6 + $0x2]]
    %s169 = sld [smem:[#allocation6 + $0x3]]
    %s170 = sld [smem:[#allocation6 + $0x4]]
    %s171 = sld [smem:[#allocation6 + $0x5]]
    %s172 = sld [smem:[#allocation6 + $0x6]]
    %s173 = sld [smem:[#allocation6 + $0x7]]
    %s174 = sld [smem:[#allocation6 + $0x8]]
    %s175 = sld [smem:[#allocation6 + $0x9]]
    %s176 = sld [smem:[#allocation6 + $0xa]]
    %s177 = sld [smem:[#allocation6 + $0xb]]
    %s178 = sld [smem:[#allocation6 + $0xc]]
    %s179 = sld [smem:[#allocation6 + $0xd]]
    %s180 = sld [smem:[#allocation6 + $0xe]]
    %s181 = sld [smem:[#allocation6 + $0xf]]
    %s182 = sld [smem:[#allocation6 + $0x10]]
    %s183 = sld [smem:[#allocation6 + $0x11]]
    %s184 = sld [smem:[#allocation7]]
    %s185 = sld [smem:[#allocation7 + $0x1]]
    %s186 = sld [smem:[#allocation7 + $0x2]]
    %s187 = sld [smem:[#allocation7 + $0x3]]
    %s188 = sld [smem:[#allocation7 + $0x4]]
    %s189 = sld [smem:[#allocation7 + $0x5]]
    %s190 = sld [smem:[#allocation7 + $0x6]]
    %s191 = sld [smem:[#allocation7 + $0x7]]
    %s192 = sld [smem:[#allocation7 + $0x8]]
    %s193 = sld [smem:[#allocation9]]
    %s194 = sld [smem:[#allocation9 + $0x1]]
    %s195 = sld [smem:[#allocation9 + $0x2]]
    %s196 = sld [smem:[#allocation9 + $0x3]]
    %s197 = sld [smem:[#allocation9 + $0x4]]
    %s198 = sld [smem:[#allocation9 + $0x5]]
    %s199 = sld [smem:[#allocation9 + $0x6]]
    %s200 = sld [smem:[#allocation9 + $0x7]]
    %s201 = sld [smem:[#allocation9 + $0x8]]
    %s202 = sld [smem:[#allocation9 + $0x9]]
    %s203 = sld [smem:[#allocation9 + $0xa]]
    %s204 = sld [smem:[#allocation9 + $0xb]]
    %s205 = sld [smem:[#allocation9 + $0xc]]
    %s206 = sld [smem:[#allocation9 + $0xd]]
    %s207 = sld [smem:[#allocation9 + $0xe]]
    %s208 = sld [smem:[#allocation9 + $0xf]]
    %s209 = sld [smem:[#allocation9 + $0x10]]
    %s210 = sld [smem:[#allocation9 + $0x11]]
    %s211 = sld [smem:[#allocation10]]
    %s212 = sld [smem:[#allocation10 + $0x1]]
    %v213 = vld [vmem:[#allocation2] sm:$0xff]
    %v214 = vld [vmem:[#allocation2 + $0x8] sm:$0xff]
    %v215 = vld [vmem:[#allocation2 + $0x10] sm:$0xff]
    %v216 = vld [vmem:[#allocation2 + $0x18] sm:$0xff]
    %v217 = vld [vmem:[#allocation2 + $0x20] sm:$0xff]
    %v218 = vld [vmem:[#allocation2 + $0x28] sm:$0xff]
    %v219 = vld [vmem:[#allocation2 + $0x30] sm:$0xff]
    %v220 = vld [vmem:[#allocation2 + $0x38] sm:$0xff]
    %221 = vmatprep.subr.mxu0 0.0
    %222 = vmatpush1.msra.mxu0 %v149
    %223 = vmatprep.subr.mxu0 0.0
    %224 = vmatpush1.msra.mxu0 %v150
    %225 = vmatprep.subr.mxu0 0.0
    %226 = vmatpush1.msra.mxu0 %v151
    %227 = vmatprep.subr.mxu0 0.0
    %228 = vmatpush1.msra.mxu0 %v152
    %229 = vmatprep.subr.mxu0 0.0
    %230 = vmatpush1.msra.mxu0 %v153
    %231 = vmatprep.subr.mxu0 0.0
    %232 = vmatpush1.msra.mxu0 %v154
    %233 = vmatprep.subr.mxu0 0.0
    %234 = vmatpush1.msra.mxu0 %v155
    %235 = vmatprep.subr.mxu0 0.0
    %236 = vmatpush1.msra.mxu0 %v156
    %237 = vmatprep.subr.mxu0 0.0
    %238 = vmatpush1.msra.mxu0 %v157
    %239 = vmatprep.subr.mxu0 0.0
    %240 = vmatpush1.msra.mxu0 %v158
    %241 = vmatprep.subr.mxu0 0.0
    %242 = vmatpush1.msra.mxu0 %v159
    %243 = vmatprep.subr.mxu0 0.0
    %244 = vmatpush1.msra.mxu0 %v160
    %245 = vmatprep.subr.mxu0 0.0
    %246 = vmatpush1.msra.mxu0 %v161
    %247 = vmatprep.subr.mxu0 0.0
    %248 = vmatpush1.msra.mxu0 %v162
    %249 = vmatprep.subr.mxu0 0.0
    %250 = vmatpush1.msra.mxu0 %v163
    %251 = vmatprep.subr.mxu0 0.0
    %252 = vmatpush1.msra.mxu0 %v164
    %253 = vmatprep.subr.mxu0 0.0
    %254 = vmatpush1.msra.mxu0 0.0
    %255 = vmatprep.subr.mxu0 0.0
    %256 = vmatpush1.msra.mxu0 0.0
    %257 = vmatprep.subr.mxu0 0.0
    %258 = vmatpush1.msra.mxu0 0.0
    %259 = vmatprep.subr.mxu0 0.0
    %260 = vmatpush1.msra.mxu0 0.0
    %261 = vmatprep.subr.mxu0 0.0
    %262 = vmatpush1.msra.mxu0 0.0
    %263 = vmatprep.subr.mxu0 0.0
    %264 = vmatpush1.msra.mxu0 0.0
    %265 = vmatprep.subr.mxu0 0.0
    %266 = vmatpush1.msra.mxu0 0.0
    %267 = vmatprep.subr.mxu0 0.0
    %268 = vmatpush1.msra.mxu0 0.0
    %269 = vmatprep.subr.mxu0 0.0
    %270 = vmatpush1.msra.mxu0 0.0
    %271 = vmatprep.subr.mxu0 0.0
    %272 = vmatpush1.msra.mxu0 0.0
    %273 = vmatprep.subr.mxu0 0.0
    %274 = vmatpush1.msra.mxu0 0.0
    %275 = vmatprep.subr.mxu0 0.0
    %276 = vmatpush1.msra.mxu0 0.0
    %277 = vmatprep.subr.mxu0 0.0
    %278 = vmatpush1.msra.mxu0 0.0
    %279 = vmatprep.subr.mxu0 0.0
    %280 = vmatpush1.msra.mxu0 0.0
    %281 = vmatprep.subr.mxu0 0.0
    %282 = vmatpush1.msra.mxu0 0.0
    %283 = vmatprep.subr.mxu0 0.0
    %284 = vmatpush1.msra.mxu0 0.0
    %285 = vmatprep.mubr.f32.mxu0 0.0
    %286 = vmatmul.mubr.f32.gmra.mrb[0].mxu0 %v213
    %v287 = vpop.f32.mrb[0].mxu0
    %v288 = vadd.f32 0.0, %v287
    %v289 = vpop.f32.mrb[0].mxu0
    %290 = vmatprep.mubr.f32.mxu0 0.0
    %291 = vmatmul.mubr.f32.gmra.mrb[0].mxu0 %v214
    %v292 = vpop.f32.mrb[0].mxu0
    %v293 = vadd.f32 0.0, %v292
    %v294 = vpop.f32.mrb[0].mxu0
    %295 = vmatprep.mubr.f32.mxu0 0.0
    %296 = vmatmul.mubr.f32.gmra.mrb[0].mxu0 %v215
    %v297 = vpop.f32.mrb[0].mxu0
    %v298 = vadd.f32 0.0, %v297
    %v299 = vpop.f32.mrb[0].mxu0
    %300 = vmatprep.mubr.f32.mxu0 0.0
    %301 = vmatmul.mubr.f32.gmra.mrb[0].mxu0 %v216
    %v302 = vpop.f32.mrb[0].mxu0
    %v303 = vadd.f32 0.0, %v302
    %v304 = vpop.f32.mrb[0].mxu0
    %305 = vmatprep.mubr.f32.mxu0 0.0
    %306 = vmatmul.mubr.f32.gmra.mrb[0].mxu0 %v217
    %v307 = vpop.f32.mrb[0].mxu0
    %v308 = vadd.f32 0.0, %v307
    %v309 = vpop.f32.mrb[0].mxu0
    %310 = vmatprep.mubr.f32.mxu0 0.0
    %311 = vmatmul.mubr.f32.gmra.mrb[0].mxu0 %v218
    %v312 = vpop.f32.mrb[0].mxu0
    %v313 = vadd.f32 0.0, %v312
    %v314 = vpop.f32.mrb[0].mxu0
    %315 = vmatprep.mubr.f32.mxu0 0.0
    %316 = vmatmul.mubr.f32.gmra.mrb[0].mxu0 %v219
    %v317 = vpop.f32.mrb[0].mxu0
    %v318 = vadd.f32 0.0, %v317
    %v319 = vpop.f32.mrb[0].mxu0
    %320 = vmatprep.mubr.f32.mxu0 0.0
    %321 = vmatmul.mubr.f32.gmra.mrb[0].mxu0 %v220
    %v322 = vpop.f32.mrb[0].mxu0
    %v323 = vadd.f32 0.0, %v322
    %v324 = vpop.f32.mrb[0].mxu0
    %325 = vdwg.mxu0
    %v326 = vsel %vm165, %v213, %v288
    %v327 = vsel %vm165, %v214, %v293
    %v328 = vsel %vm165, %v215, %v298
    %v329 = vsel %vm165, %v216, %v303
    %v330 = vsel %vm165, %v217, %v308
    %v331 = vsel %vm165, %v218, %v313
    %v332 = vsel %vm165, %v219, %v318
    %v333 = vsel %vm165, %v220, %v323
    %v334 = vsel %vm165, %v288, %v213
    %v335 = vsel %vm165, %v293, %v214
    %v336 = vsel %vm165, %v298, %v215
    %v337 = vsel %vm165, %v303, %v216
    %v338 = vsel %vm165, %v308, %v217
    %v339 = vsel %vm165, %v313, %v218
    %v340 = vsel %vm165, %v318, %v219
    %v341 = vsel %vm165, %v323, %v220
    %v342 = vstv %s166
    %v343 = vmul.f32 %v342, %v326
    %v344 = vmul.f32 %v342, %v327
    %v345 = vmul.f32 %v342, %v328
    %v346 = vmul.f32 %v342, %v329
    %v347 = vmul.f32 %v342, %v330
    %v348 = vmul.f32 %v342, %v331
    %v349 = vmul.f32 %v342, %v332
    %v350 = vmul.f32 %v342, %v333
    %v351 = vstv %s167
    %v352 = vmul.f32 %v351, %v334
    %v353 = vmul.f32 %v351, %v335
    %v354 = vmul.f32 %v351, %v336
    %v355 = vmul.f32 %v351, %v337
    %v356 = vmul.f32 %v351, %v338
    %v357 = vmul.f32 %v351, %v339
    %v358 = vmul.f32 %v351, %v340
    %v359 = vmul.f32 %v351, %v341
    %v360 = vadd.f32 %v343, %v352
    %v361 = vadd.f32 %v344, %v353
    %v362 = vadd.f32 %v345, %v354
    %v363 = vadd.f32 %v346, %v355
    %v364 = vadd.f32 %v347, %v356
    %v365 = vadd.f32 %v348, %v357
    %v366 = vadd.f32 %v349, %v358
    %v367 = vadd.f32 %v350, %v359
    %v368 = vstv %s184
    %v369 = vadd.f32 %v360, %v368
    %v370 = vadd.f32 %v361, %v368
    %v371 = vadd.f32 %v362, %v368
    %v372 = vadd.f32 %v363, %v368
    %v373 = vadd.f32 %v364, %v368
    %v374 = vadd.f32 %v365, %v368
    %v375 = vadd.f32 %v366, %v368
    %v376 = vadd.f32 %v367, %v368
    %v377 = vmul.f32 %v369, 0.01
    %v378 = vmul.f32 %v370, 0.01
    %v379 = vmul.f32 %v371, 0.01
    %v380 = vmul.f32 %v372, 0.01
    %v381 = vmul.f32 %v373, 0.01
    %v382 = vmul.f32 %v374, 0.01
    %v383 = vmul.f32 %v375, 0.01
    %v384 = vmul.f32 %v376, 0.01
    %v385 = vmax.f32 %v369, %v377
    %v386 = vmax.f32 %v370, %v378
    %v387 = vmax.f32 %v371, %v379
    %v388 = vmax.f32 %v372, %v380
    %v389 = vmax.f32 %v373, %v381
    %v390 = vmax.f32 %v374, %v382
    %v391 = vmax.f32 %v375, %v383
    %v392 = vmax.f32 %v376, %v384
    %v393 = vstv %s193
    %v394 = vmul.f32 %v393, %v385
    %v395 = vmul.f32 %v393, %v386
    %v396 = vmul.f32 %v393, %v387
    %v397 = vmul.f32 %v393, %v388
    %v398 = vmul.f32 %v393, %v389
    %v399 = vmul.f32 %v393, %v390
    %v400 = vmul.f32 %v393, %v391
    %v401 = vmul.f32 %v393, %v392
    %v402 = vstv %s202
    %v403 = vmul.f32 %v402, %v385
    %v404 = vmul.f32 %v402, %v386
    %v405 = vmul.f32 %v402, %v387
    %v406 = vmul.f32 %v402, %v388
    %v407 = vmul.f32 %v402, %v389
    %v408 = vmul.f32 %v402, %v390
    %v409 = vmul.f32 %v402, %v391
    %v410 = vmul.f32 %v402, %v392
    %v411 = vstv %s168
    %v412 = vmul.f32 %v411, %v326
    %v413 = vmul.f32 %v411, %v327
    %v414 = vmul.f32 %v411, %v328
    %v415 = vmul.f32 %v411, %v329
    %v416 = vmul.f32 %v411, %v330
    %v417 = vmul.f32 %v411, %v331
    %v418 = vmul.f32 %v411, %v332
    %v419 = vmul.f32 %v411, %v333
    %v420 = vstv %s169
    %v421 = vmul.f32 %v420, %v334
    %v422 = vmul.f32 %v420, %v335
    %v423 = vmul.f32 %v420, %v336
    %v424 = vmul.f32 %v420, %v337
    %v425 = vmul.f32 %v420, %v338
    %v426 = vmul.f32 %v420, %v339
    %v427 = vmul.f32 %v420, %v340
    %v428 = vmul.f32 %v420, %v341
    %v429 = vadd.f32 %v412, %v421
    %v430 = vadd.f32 %v413, %v422
    %v431 = vadd.f32 %v414, %v423
    %v432 = vadd.f32 %v415, %v424
    %v433 = vadd.f32 %v416, %v425
    %v434 = vadd.f32 %v417, %v426
    %v435 = vadd.f32 %v418, %v427
    %v436 = vadd.f32 %v419, %v428
    %v437 = vstv %s185
    %v438 = vadd.f32 %v429, %v437
    %v439 = vadd.f32 %v430, %v437
    %v440 = vadd.f32 %v431, %v437
    %v441 = vadd.f32 %v432, %v437
    %v442 = vadd.f32 %v433, %v437
    %v443 = vadd.f32 %v434, %v437
    %v444 = vadd.f32 %v435, %v437
    %v445 = vadd.f32 %v436, %v437
    %v446 = vmul.f32 %v438, 0.01
    %v447 = vmul.f32 %v439, 0.01
    %v448 = vmul.f32 %v440, 0.01
    %v449 = vmul.f32 %v441, 0.01
    %v450 = vmul.f32 %v442, 0.01
    %v451 = vmul.f32 %v443, 0.01
    %v452 = vmul.f32 %v444, 0.01
    %v453 = vmul.f32 %v445, 0.01
    %v454 = vmax.f32 %v438, %v446
    %v455 = vmax.f32 %v439, %v447
    %v456 = vmax.f32 %v440, %v448
    %v457 = vmax.f32 %v441, %v449
    %v458 = vmax.f32 %v442, %v450
    %v459 = vmax.f32 %v443, %v451
    %v460 = vmax.f32 %v444, %v452
    %v461 = vmax.f32 %v445, %v453
    %v462 = vstv %s194
    %v463 = vmul.f32 %v462, %v454
    %v464 = vmul.f32 %v462, %v455
    %v465 = vmul.f32 %v462, %v456
    %v466 = vmul.f32 %v462, %v457
    %v467 = vmul.f32 %v462, %v458
    %v468 = vmul.f32 %v462, %v459
    %v469 = vmul.f32 %v462, %v460
    %v470 = vmul.f32 %v462, %v461
    %v471 = vadd.f32 %v394, %v463
    %v472 = vadd.f32 %v395, %v464
    %v473 = vadd.f32 %v396, %v465
    %v474 = vadd.f32 %v397, %v466
    %v475 = vadd.f32 %v398, %v467
    %v476 = vadd.f32 %v399, %v468
    %v477 = vadd.f32 %v400, %v469
    %v478 = vadd.f32 %v401, %v470
    %v479 = vstv %s203
    %v480 = vmul.f32 %v479, %v454
    %v481 = vmul.f32 %v479, %v455
    %v482 = vmul.f32 %v479, %v456
    %v483 = vmul.f32 %v479, %v457
    %v484 = vmul.f32 %v479, %v458
    %v485 = vmul.f32 %v479, %v459
    %v486 = vmul.f32 %v479, %v460
    %v487 = vmul.f32 %v479, %v461
    %v488 = vadd.f32 %v403, %v480
    %v489 = vadd.f32 %v404, %v481
    %v490 = vadd.f32 %v405, %v482
    %v491 = vadd.f32 %v406, %v483
    %v492 = vadd.f32 %v407, %v484
    %v493 = vadd.f32 %v408, %v485
    %v494 = vadd.f32 %v409, %v486
    %v495 = vadd.f32 %v410, %v487
    %v496 = vstv %s170
    %v497 = vmul.f32 %v496, %v326
    %v498 = vmul.f32 %v496, %v327
    %v499 = vmul.f32 %v496, %v328
    %v500 = vmul.f32 %v496, %v329
    %v501 = vmul.f32 %v496, %v330
    %v502 = vmul.f32 %v496, %v331
    %v503 = vmul.f32 %v496, %v332
    %v504 = vmul.f32 %v496, %v333
    %v505 = vstv %s171
    %v506 = vmul.f32 %v505, %v334
    %v507 = vmul.f32 %v505, %v335
    %v508 = vmul.f32 %v505, %v336
    %v509 = vmul.f32 %v505, %v337
    %v510 = vmul.f32 %v505, %v338
    %v511 = vmul.f32 %v505, %v339
    %v512 = vmul.f32 %v505, %v340
    %v513 = vmul.f32 %v505, %v341
    %v514 = vadd.f32 %v497, %v506
    %v515 = vadd.f32 %v498, %v507
    %v516 = vadd.f32 %v499, %v508
    %v517 = vadd.f32 %v500, %v509
    %v518 = vadd.f32 %v501, %v510
    %v519 = vadd.f32 %v502, %v511
    %v520 = vadd.f32 %v503, %v512
    %v521 = vadd.f32 %v504, %v513
    %v522 = vstv %s186
    %v523 = vadd.f32 %v514, %v522
    %v524 = vadd.f32 %v515, %v522
    %v525 = vadd.f32 %v516, %v522
    %v526 = vadd.f32 %v517, %v522
    %v527 = vadd.f32 %v518, %v522
    %v528 = vadd.f32 %v519, %v522
    %v529 = vadd.f32 %v520, %v522
    %v530 = vadd.f32 %v521, %v522
    %v531 = vmul.f32 %v523, 0.01
    %v532 = vmul.f32 %v524, 0.01
    %v533 = vmul.f32 %v525, 0.01
    %v534 = vmul.f32 %v526, 0.01
    %v535 = vmul.f32 %v527, 0.01
    %v536 = vmul.f32 %v528, 0.01
    %v537 = vmul.f32 %v529, 0.01
    %v538 = vmul.f32 %v530, 0.01
    %v539 = vmax.f32 %v523, %v531
    %v540 = vmax.f32 %v524, %v532
    %v541 = vmax.f32 %v525, %v533
    %v542 = vmax.f32 %v526, %v534
    %v543 = vmax.f32 %v527, %v535
    %v544 = vmax.f32 %v528, %v536
    %v545 = vmax.f32 %v529, %v537
    %v546 = vmax.f32 %v530, %v538
    %v547 = vstv %s195
    %v548 = vmul.f32 %v547, %v539
    %v549 = vmul.f32 %v547, %v540
    %v550 = vmul.f32 %v547, %v541
    %v551 = vmul.f32 %v547, %v542
    %v552 = vmul.f32 %v547, %v543
    %v553 = vmul.f32 %v547, %v544
    %v554 = vmul.f32 %v547, %v545
    %v555 = vmul.f32 %v547, %v546
    %v556 = vadd.f32 %v471, %v548
    %v557 = vadd.f32 %v472, %v549
    %v558 = vadd.f32 %v473, %v550
    %v559 = vadd.f32 %v474, %v551
    %v560 = vadd.f32 %v475, %v552
    %v561 = vadd.f32 %v476, %v553
    %v562 = vadd.f32 %v477, %v554
    %v563 = vadd.f32 %v478, %v555
    %v564 = vstv %s204
    %v565 = vmul.f32 %v564, %v539
    %v566 = vmul.f32 %v564, %v540
    %v567 = vmul.f32 %v564, %v541
    %v568 = vmul.f32 %v564, %v542
    %v569 = vmul.f32 %v564, %v543
    %v570 = vmul.f32 %v564, %v544
    %v571 = vmul.f32 %v564, %v545
    %v572 = vmul.f32 %v564, %v546
    %v573 = vadd.f32 %v488, %v565
    %v574 = vadd.f32 %v489, %v566
    %v575 = vadd.f32 %v490, %v567
    %v576 = vadd.f32 %v491, %v568
    %v577 = vadd.f32 %v492, %v569
    %v578 = vadd.f32 %v493, %v570
    %v579 = vadd.f32 %v494, %v571
    %v580 = vadd.f32 %v495, %v572
    %v581 = vstv %s172
    %v582 = vmul.f32 %v581, %v326
    %v583 = vmul.f32 %v581, %v327
    %v584 = vmul.f32 %v581, %v328
    %v585 = vmul.f32 %v581, %v329
    %v586 = vmul.f32 %v581, %v330
    %v587 = vmul.f32 %v581, %v331
    %v588 = vmul.f32 %v581, %v332
    %v589 = vmul.f32 %v581, %v333
    %v590 = vstv %s173
    %v591 = vmul.f32 %v590, %v334
    %v592 = vmul.f32 %v590, %v335
    %v593 = vmul.f32 %v590, %v336
    %v594 = vmul.f32 %v590, %v337
    %v595 = vmul.f32 %v590, %v338
    %v596 = vmul.f32 %v590, %v339
    %v597 = vmul.f32 %v590, %v340
    %v598 = vmul.f32 %v590, %v341
    %v599 = vadd.f32 %v582, %v591
    %v600 = vadd.f32 %v583, %v592
    %v601 = vadd.f32 %v584, %v593
    %v602 = vadd.f32 %v585, %v594
    %v603 = vadd.f32 %v586, %v595
    %v604 = vadd.f32 %v587, %v596
    %v605 = vadd.f32 %v588, %v597
    %v606 = vadd.f32 %v589, %v598
    %v607 = vstv %s187
    %v608 = vadd.f32 %v599, %v607
    %v609 = vadd.f32 %v600, %v607
    %v610 = vadd.f32 %v601, %v607
    %v611 = vadd.f32 %v602, %v607
    %v612 = vadd.f32 %v603, %v607
    %v613 = vadd.f32 %v604, %v607
    %v614 = vadd.f32 %v605, %v607
    %v615 = vadd.f32 %v606, %v607
    %v616 = vmul.f32 %v608, 0.01
    %v617 = vmul.f32 %v609, 0.01
    %v618 = vmul.f32 %v610, 0.01
    %v619 = vmul.f32 %v611, 0.01
    %v620 = vmul.f32 %v612, 0.01
    %v621 = vmul.f32 %v613, 0.01
    %v622 = vmul.f32 %v614, 0.01
    %v623 = vmul.f32 %v615, 0.01
    %v624 = vmax.f32 %v608, %v616
    %v625 = vmax.f32 %v609, %v617
    %v626 = vmax.f32 %v610, %v618
    %v627 = vmax.f32 %v611, %v619
    %v628 = vmax.f32 %v612, %v620
    %v629 = vmax.f32 %v613, %v621
    %v630 = vmax.f32 %v614, %v622
    %v631 = vmax.f32 %v615, %v623
    %v632 = vstv %s196
    %v633 = vmul.f32 %v632, %v624
    %v634 = vmul.f32 %v632, %v625
    %v635 = vmul.f32 %v632, %v626
    %v636 = vmul.f32 %v632, %v627
    %v637 = vmul.f32 %v632, %v628
    %v638 = vmul.f32 %v632, %v629
    %v639 = vmul.f32 %v632, %v630
    %v640 = vmul.f32 %v632, %v631
    %v641 = vadd.f32 %v556, %v633
    %v642 = vadd.f32 %v557, %v634
    %v643 = vadd.f32 %v558, %v635
    %v644 = vadd.f32 %v559, %v636
    %v645 = vadd.f32 %v560, %v637
    %v646 = vadd.f32 %v561, %v638
    %v647 = vadd.f32 %v562, %v639
    %v648 = vadd.f32 %v563, %v640
    %v649 = vstv %s205
    %v650 = vmul.f32 %v649, %v624
    %v651 = vmul.f32 %v649, %v625
    %v652 = vmul.f32 %v649, %v626
    %v653 = vmul.f32 %v649, %v627
    %v654 = vmul.f32 %v649, %v628
    %v655 = vmul.f32 %v649, %v629
    %v656 = vmul.f32 %v649, %v630
    %v657 = vmul.f32 %v649, %v631
    %v658 = vadd.f32 %v573, %v650
    %v659 = vadd.f32 %v574, %v651
    %v660 = vadd.f32 %v575, %v652
    %v661 = vadd.f32 %v576, %v653
    %v662 = vadd.f32 %v577, %v654
    %v663 = vadd.f32 %v578, %v655
    %v664 = vadd.f32 %v579, %v656
    %v665 = vadd.f32 %v580, %v657
    %v666 = vstv %s174
    %v667 = vmul.f32 %v666, %v326
    %v668 = vmul.f32 %v666, %v327
    %v669 = vmul.f32 %v666, %v328
    %v670 = vmul.f32 %v666, %v329
    %v671 = vmul.f32 %v666, %v330
    %v672 = vmul.f32 %v666, %v331
    %v673 = vmul.f32 %v666, %v332
    %v674 = vmul.f32 %v666, %v333
    %v675 = vstv %s175
    %v676 = vmul.f32 %v675, %v334
    %v677 = vmul.f32 %v675, %v335
    %v678 = vmul.f32 %v675, %v336
    %v679 = vmul.f32 %v675, %v337
    %v680 = vmul.f32 %v675, %v338
    %v681 = vmul.f32 %v675, %v339
    %v682 = vmul.f32 %v675, %v340
    %v683 = vmul.f32 %v675, %v341
    %v684 = vadd.f32 %v667, %v676
    %v685 = vadd.f32 %v668, %v677
    %v686 = vadd.f32 %v669, %v678
    %v687 = vadd.f32 %v670, %v679
    %v688 = vadd.f32 %v671, %v680
    %v689 = vadd.f32 %v672, %v681
    %v690 = vadd.f32 %v673, %v682
    %v691 = vadd.f32 %v674, %v683
    %v692 = vstv %s188
    %v693 = vadd.f32 %v684, %v692
    %v694 = vadd.f32 %v685, %v692
    %v695 = vadd.f32 %v686, %v692
    %v696 = vadd.f32 %v687, %v692
    %v697 = vadd.f32 %v688, %v692
    %v698 = vadd.f32 %v689, %v692
    %v699 = vadd.f32 %v690, %v692
    %v700 = vadd.f32 %v691, %v692
    %v701 = vmul.f32 %v693, 0.01
    %v702 = vmul.f32 %v694, 0.01
    %v703 = vmul.f32 %v695, 0.01
    %v704 = vmul.f32 %v696, 0.01
    %v705 = vmul.f32 %v697, 0.01
    %v706 = vmul.f32 %v698, 0.01
    %v707 = vmul.f32 %v699, 0.01
    %v708 = vmul.f32 %v700, 0.01
    %v709 = vmax.f32 %v693, %v701
    %v710 = vmax.f32 %v694, %v702
    %v711 = vmax.f32 %v695, %v703
    %v712 = vmax.f32 %v696, %v704
    %v713 = vmax.f32 %v697, %v705
    %v714 = vmax.f32 %v698, %v706
    %v715 = vmax.f32 %v699, %v707
    %v716 = vmax.f32 %v700, %v708
    %v717 = vstv %s197
    %v718 = vmul.f32 %v717, %v709
    %v719 = vmul.f32 %v717, %v710
    %v720 = vmul.f32 %v717, %v711
    %v721 = vmul.f32 %v717, %v712
    %v722 = vmul.f32 %v717, %v713
    %v723 = vmul.f32 %v717, %v714
    %v724 = vmul.f32 %v717, %v715
    %v725 = vmul.f32 %v717, %v716
    %v726 = vadd.f32 %v641, %v718
    %v727 = vadd.f32 %v642, %v719
    %v728 = vadd.f32 %v643, %v720
    %v729 = vadd.f32 %v644, %v721
    %v730 = vadd.f32 %v645, %v722
    %v731 = vadd.f32 %v646, %v723
    %v732 = vadd.f32 %v647, %v724
    %v733 = vadd.f32 %v648, %v725
    %v734 = vstv %s206
    %v735 = vmul.f32 %v734, %v709
    %v736 = vmul.f32 %v734, %v710
    %v737 = vmul.f32 %v734, %v711
    %v738 = vmul.f32 %v734, %v712
    %v739 = vmul.f32 %v734, %v713
    %v740 = vmul.f32 %v734, %v714
    %v741 = vmul.f32 %v734, %v715
    %v742 = vmul.f32 %v734, %v716
    %v743 = vadd.f32 %v658, %v735
    %v744 = vadd.f32 %v659, %v736
    %v745 = vadd.f32 %v660, %v737
    %v746 = vadd.f32 %v661, %v738
    %v747 = vadd.f32 %v662, %v739
    %v748 = vadd.f32 %v663, %v740
    %v749 = vadd.f32 %v664, %v741
    %v750 = vadd.f32 %v665, %v742
    %v751 = vstv %s176
    %v752 = vmul.f32 %v751, %v326
    %v753 = vmul.f32 %v751, %v327
    %v754 = vmul.f32 %v751, %v328
    %v755 = vmul.f32 %v751, %v329
    %v756 = vmul.f32 %v751, %v330
    %v757 = vmul.f32 %v751, %v331
    %v758 = vmul.f32 %v751, %v332
    %v759 = vmul.f32 %v751, %v333
    %v760 = vstv %s177
    %v761 = vmul.f32 %v760, %v334
    %v762 = vmul.f32 %v760, %v335
    %v763 = vmul.f32 %v760, %v336
    %v764 = vmul.f32 %v760, %v337
    %v765 = vmul.f32 %v760, %v338
    %v766 = vmul.f32 %v760, %v339
    %v767 = vmul.f32 %v760, %v340
    %v768 = vmul.f32 %v760, %v341
    %v769 = vadd.f32 %v752, %v761
    %v770 = vadd.f32 %v753, %v762
    %v771 = vadd.f32 %v754, %v763
    %v772 = vadd.f32 %v755, %v764
    %v773 = vadd.f32 %v756, %v765
    %v774 = vadd.f32 %v757, %v766
    %v775 = vadd.f32 %v758, %v767
    %v776 = vadd.f32 %v759, %v768
    %v777 = vstv %s189
    %v778 = vadd.f32 %v769, %v777
    %v779 = vadd.f32 %v770, %v777
    %v780 = vadd.f32 %v771, %v777
    %v781 = vadd.f32 %v772, %v777
    %v782 = vadd.f32 %v773, %v777
    %v783 = vadd.f32 %v774, %v777
    %v784 = vadd.f32 %v775, %v777
    %v785 = vadd.f32 %v776, %v777
    %v786 = vmul.f32 %v778, 0.01
    %v787 = vmul.f32 %v779, 0.01
    %v788 = vmul.f32 %v780, 0.01
    %v789 = vmul.f32 %v781, 0.01
    %v790 = vmul.f32 %v782, 0.01
    %v791 = vmul.f32 %v783, 0.01
    %v792 = vmul.f32 %v784, 0.01
    %v793 = vmul.f32 %v785, 0.01
    %v794 = vmax.f32 %v778, %v786
    %v795 = vmax.f32 %v779, %v787
    %v796 = vmax.f32 %v780, %v788
    %v797 = vmax.f32 %v781, %v789
    %v798 = vmax.f32 %v782, %v790
    %v799 = vmax.f32 %v783, %v791
    %v800 = vmax.f32 %v784, %v792
    %v801 = vmax.f32 %v785, %v793
    %v802 = vstv %s198
    %v803 = vmul.f32 %v802, %v794
    %v804 = vmul.f32 %v802, %v795
    %v805 = vmul.f32 %v802, %v796
    %v806 = vmul.f32 %v802, %v797
    %v807 = vmul.f32 %v802, %v798
    %v808 = vmul.f32 %v802, %v799
    %v809 = vmul.f32 %v802, %v800
    %v810 = vmul.f32 %v802, %v801
    %v811 = vadd.f32 %v726, %v803
    %v812 = vadd.f32 %v727, %v804
    %v813 = vadd.f32 %v728, %v805
    %v814 = vadd.f32 %v729, %v806
    %v815 = vadd.f32 %v730, %v807
    %v816 = vadd.f32 %v731, %v808
    %v817 = vadd.f32 %v732, %v809
    %v818 = vadd.f32 %v733, %v810
    %v819 = vstv %s207
    %v820 = vmul.f32 %v819, %v794
    %v821 = vmul.f32 %v819, %v795
    %v822 = vmul.f32 %v819, %v796
    %v823 = vmul.f32 %v819, %v797
    %v824 = vmul.f32 %v819, %v798
    %v825 = vmul.f32 %v819, %v799
    %v826 = vmul.f32 %v819, %v800
    %v827 = vmul.f32 %v819, %v801
    %v828 = vadd.f32 %v743, %v820
    %v829 = vadd.f32 %v744, %v821
    %v830 = vadd.f32 %v745, %v822
    %v831 = vadd.f32 %v746, %v823
    %v832 = vadd.f32 %v747, %v824
    %v833 = vadd.f32 %v748, %v825
    %v834 = vadd.f32 %v749, %v826
    %v835 = vadd.f32 %v750, %v827
    %v836 = vstv %s178
    %v837 = vmul.f32 %v836, %v326
    %v838 = vmul.f32 %v836, %v327
    %v839 = vmul.f32 %v836, %v328
    %v840 = vmul.f32 %v836, %v329
    %v841 = vmul.f32 %v836, %v330
    %v842 = vmul.f32 %v836, %v331
    %v843 = vmul.f32 %v836, %v332
    %v844 = vmul.f32 %v836, %v333
    %v845 = vstv %s179
    %v846 = vmul.f32 %v845, %v334
    %v847 = vmul.f32 %v845, %v335
    %v848 = vmul.f32 %v845, %v336
    %v849 = vmul.f32 %v845, %v337
    %v850 = vmul.f32 %v845, %v338
    %v851 = vmul.f32 %v845, %v339
    %v852 = vmul.f32 %v845, %v340
    %v853 = vmul.f32 %v845, %v341
    %v854 = vadd.f32 %v837, %v846
    %v855 = vadd.f32 %v838, %v847
    %v856 = vadd.f32 %v839, %v848
    %v857 = vadd.f32 %v840, %v849
    %v858 = vadd.f32 %v841, %v850
    %v859 = vadd.f32 %v842, %v851
    %v860 = vadd.f32 %v843, %v852
    %v861 = vadd.f32 %v844, %v853
    %v862 = vstv %s190
    %v863 = vadd.f32 %v854, %v862
    %v864 = vadd.f32 %v855, %v862
    %v865 = vadd.f32 %v856, %v862
    %v866 = vadd.f32 %v857, %v862
    %v867 = vadd.f32 %v858, %v862
    %v868 = vadd.f32 %v859, %v862
    %v869 = vadd.f32 %v860, %v862
    %v870 = vadd.f32 %v861, %v862
    %v871 = vmul.f32 %v863, 0.01
    %v872 = vmul.f32 %v864, 0.01
    %v873 = vmul.f32 %v865, 0.01
    %v874 = vmul.f32 %v866, 0.01
    %v875 = vmul.f32 %v867, 0.01
    %v876 = vmul.f32 %v868, 0.01
    %v877 = vmul.f32 %v869, 0.01
    %v878 = vmul.f32 %v870, 0.01
    %v879 = vmax.f32 %v863, %v871
    %v880 = vmax.f32 %v864, %v872
    %v881 = vmax.f32 %v865, %v873
    %v882 = vmax.f32 %v866, %v874
    %v883 = vmax.f32 %v867, %v875
    %v884 = vmax.f32 %v868, %v876
    %v885 = vmax.f32 %v869, %v877
    %v886 = vmax.f32 %v870, %v878
    %v887 = vstv %s199
    %v888 = vmul.f32 %v887, %v879
    %v889 = vmul.f32 %v887, %v880
    %v890 = vmul.f32 %v887, %v881
    %v891 = vmul.f32 %v887, %v882
    %v892 = vmul.f32 %v887, %v883
    %v893 = vmul.f32 %v887, %v884
    %v894 = vmul.f32 %v887, %v885
    %v895 = vmul.f32 %v887, %v886
    %v896 = vadd.f32 %v811, %v888
    %v897 = vadd.f32 %v812, %v889
    %v898 = vadd.f32 %v813, %v890
    %v899 = vadd.f32 %v814, %v891
    %v900 = vadd.f32 %v815, %v892
    %v901 = vadd.f32 %v816, %v893
    %v902 = vadd.f32 %v817, %v894
    %v903 = vadd.f32 %v818, %v895
    %v904 = vstv %s208
    %v905 = vmul.f32 %v904, %v879
    %v906 = vmul.f32 %v904, %v880
    %v907 = vmul.f32 %v904, %v881
    %v908 = vmul.f32 %v904, %v882
    %v909 = vmul.f32 %v904, %v883
    %v910 = vmul.f32 %v904, %v884
    %v911 = vmul.f32 %v904, %v885
    %v912 = vmul.f32 %v904, %v886
    %v913 = vadd.f32 %v828, %v905
    %v914 = vadd.f32 %v829, %v906
    %v915 = vadd.f32 %v830, %v907
    %v916 = vadd.f32 %v831, %v908
    %v917 = vadd.f32 %v832, %v909
    %v918 = vadd.f32 %v833, %v910
    %v919 = vadd.f32 %v834, %v911
    %v920 = vadd.f32 %v835, %v912
    %v921 = vstv %s180
    %v922 = vmul.f32 %v921, %v326
    %v923 = vmul.f32 %v921, %v327
    %v924 = vmul.f32 %v921, %v328
    %v925 = vmul.f32 %v921, %v329
    %v926 = vmul.f32 %v921, %v330
    %v927 = vmul.f32 %v921, %v331
    %v928 = vmul.f32 %v921, %v332
    %v929 = vmul.f32 %v921, %v333
    %v930 = vstv %s181
    %v931 = vmul.f32 %v930, %v334
    %v932 = vmul.f32 %v930, %v335
    %v933 = vmul.f32 %v930, %v336
    %v934 = vmul.f32 %v930, %v337
    %v935 = vmul.f32 %v930, %v338
    %v936 = vmul.f32 %v930, %v339
    %v937 = vmul.f32 %v930, %v340
    %v938 = vmul.f32 %v930, %v341
    %v939 = vadd.f32 %v922, %v931
    %v940 = vadd.f32 %v923, %v932
    %v941 = vadd.f32 %v924, %v933
    %v942 = vadd.f32 %v925, %v934
    %v943 = vadd.f32 %v926, %v935
    %v944 = vadd.f32 %v927, %v936
    %v945 = vadd.f32 %v928, %v937
    %v946 = vadd.f32 %v929, %v938
    %v947 = vstv %s191
    %v948 = vadd.f32 %v939, %v947
    %v949 = vadd.f32 %v940, %v947
    %v950 = vadd.f32 %v941, %v947
    %v951 = vadd.f32 %v942, %v947
    %v952 = vadd.f32 %v943, %v947
    %v953 = vadd.f32 %v944, %v947
    %v954 = vadd.f32 %v945, %v947
    %v955 = vadd.f32 %v946, %v947
    %v956 = vmul.f32 %v948, 0.01
    %v957 = vmul.f32 %v949, 0.01
    %v958 = vmul.f32 %v950, 0.01
    %v959 = vmul.f32 %v951, 0.01
    %v960 = vmul.f32 %v952, 0.01
    %v961 = vmul.f32 %v953, 0.01
    %v962 = vmul.f32 %v954, 0.01
    %v963 = vmul.f32 %v955, 0.01
    %v964 = vmax.f32 %v948, %v956
    %v965 = vmax.f32 %v949, %v957
    %v966 = vmax.f32 %v950, %v958
    %v967 = vmax.f32 %v951, %v959
    %v968 = vmax.f32 %v952, %v960
    %v969 = vmax.f32 %v953, %v961
    %v970 = vmax.f32 %v954, %v962
    %v971 = vmax.f32 %v955, %v963
    %v972 = vstv %s200
    %v973 = vmul.f32 %v972, %v964
    %v974 = vmul.f32 %v972, %v965
    %v975 = vmul.f32 %v972, %v966
    %v976 = vmul.f32 %v972, %v967
    %v977 = vmul.f32 %v972, %v968
    %v978 = vmul.f32 %v972, %v969
    %v979 = vmul.f32 %v972, %v970
    %v980 = vmul.f32 %v972, %v971
    %v981 = vadd.f32 %v896, %v973
    %v982 = vadd.f32 %v897, %v974
    %v983 = vadd.f32 %v898, %v975
    %v984 = vadd.f32 %v899, %v976
    %v985 = vadd.f32 %v900, %v977
    %v986 = vadd.f32 %v901, %v978
    %v987 = vadd.f32 %v902, %v979
    %v988 = vadd.f32 %v903, %v980
    %v989 = vstv %s209
    %v990 = vmul.f32 %v989, %v964
    %v991 = vmul.f32 %v989, %v965
    %v992 = vmul.f32 %v989, %v966
    %v993 = vmul.f32 %v989, %v967
    %v994 = vmul.f32 %v989, %v968
    %v995 = vmul.f32 %v989, %v969
    %v996 = vmul.f32 %v989, %v970
    %v997 = vmul.f32 %v989, %v971
    %v998 = vadd.f32 %v913, %v990
    %v999 = vadd.f32 %v914, %v991
    %v1000 = vadd.f32 %v915, %v992
    %v1001 = vadd.f32 %v916, %v993
    %v1002 = vadd.f32 %v917, %v994
    %v1003 = vadd.f32 %v918, %v995
    %v1004 = vadd.f32 %v919, %v996
    %v1005 = vadd.f32 %v920, %v997
    %v1006 = vstv %s182
    %v1007 = vmul.f32 %v1006, %v326
    %v1008 = vmul.f32 %v1006, %v327
    %v1009 = vmul.f32 %v1006, %v328
    %v1010 = vmul.f32 %v1006, %v329
    %v1011 = vmul.f32 %v1006, %v330
    %v1012 = vmul.f32 %v1006, %v331
    %v1013 = vmul.f32 %v1006, %v332
    %v1014 = vmul.f32 %v1006, %v333
    %v1015 = vstv %s183
    %v1016 = vmul.f32 %v1015, %v334
    %v1017 = vmul.f32 %v1015, %v335
    %v1018 = vmul.f32 %v1015, %v336
    %v1019 = vmul.f32 %v1015, %v337
    %v1020 = vmul.f32 %v1015, %v338
    %v1021 = vmul.f32 %v1015, %v339
    %v1022 = vmul.f32 %v1015, %v340
    %v1023 = vmul.f32 %v1015, %v341
    %v1024 = vadd.f32 %v1007, %v1016
    %v1025 = vadd.f32 %v1008, %v1017
    %v1026 = vadd.f32 %v1009, %v1018
    %v1027 = vadd.f32 %v1010, %v1019
    %v1028 = vadd.f32 %v1011, %v1020
    %v1029 = vadd.f32 %v1012, %v1021
    %v1030 = vadd.f32 %v1013, %v1022
    %v1031 = vadd.f32 %v1014, %v1023
    %v1032 = vstv %s192
    %v1033 = vadd.f32 %v1024, %v1032
    %v1034 = vadd.f32 %v1025, %v1032
    %v1035 = vadd.f32 %v1026, %v1032
    %v1036 = vadd.f32 %v1027, %v1032
    %v1037 = vadd.f32 %v1028, %v1032
    %v1038 = vadd.f32 %v1029, %v1032
    %v1039 = vadd.f32 %v1030, %v1032
    %v1040 = vadd.f32 %v1031, %v1032
    %v1041 = vmul.f32 %v1033, 0.01
    %v1042 = vmul.f32 %v1034, 0.01
    %v1043 = vmul.f32 %v1035, 0.01
    %v1044 = vmul.f32 %v1036, 0.01
    %v1045 = vmul.f32 %v1037, 0.01
    %v1046 = vmul.f32 %v1038, 0.01
    %v1047 = vmul.f32 %v1039, 0.01
    %v1048 = vmul.f32 %v1040, 0.01
    %v1049 = vmax.f32 %v1033, %v1041
    %v1050 = vmax.f32 %v1034, %v1042
    %v1051 = vmax.f32 %v1035, %v1043
    %v1052 = vmax.f32 %v1036, %v1044
    %v1053 = vmax.f32 %v1037, %v1045
    %v1054 = vmax.f32 %v1038, %v1046
    %v1055 = vmax.f32 %v1039, %v1047
    %v1056 = vmax.f32 %v1040, %v1048
    %v1057 = vstv %s201
    %v1058 = vmul.f32 %v1057, %v1049
    %v1059 = vmul.f32 %v1057, %v1050
    %v1060 = vmul.f32 %v1057, %v1051
    %v1061 = vmul.f32 %v1057, %v1052
    %v1062 = vmul.f32 %v1057, %v1053
    %v1063 = vmul.f32 %v1057, %v1054
    %v1064 = vmul.f32 %v1057, %v1055
    %v1065 = vmul.f32 %v1057, %v1056
    %v1066 = vadd.f32 %v981, %v1058
    %v1067 = vadd.f32 %v982, %v1059
    %v1068 = vadd.f32 %v983, %v1060
    %v1069 = vadd.f32 %v984, %v1061
    %v1070 = vadd.f32 %v985, %v1062
    %v1071 = vadd.f32 %v986, %v1063
    %v1072 = vadd.f32 %v987, %v1064
    %v1073 = vadd.f32 %v988, %v1065
    %v1074 = vstv %s210
    %v1075 = vmul.f32 %v1074, %v1049
    %v1076 = vmul.f32 %v1074, %v1050
    %v1077 = vmul.f32 %v1074, %v1051
    %v1078 = vmul.f32 %v1074, %v1052
    %v1079 = vmul.f32 %v1074, %v1053
    %v1080 = vmul.f32 %v1074, %v1054
    %v1081 = vmul.f32 %v1074, %v1055
    %v1082 = vmul.f32 %v1074, %v1056
    %v1083 = vadd.f32 %v998, %v1075
    %v1084 = vadd.f32 %v999, %v1076
    %v1085 = vadd.f32 %v1000, %v1077
    %v1086 = vadd.f32 %v1001, %v1078
    %v1087 = vadd.f32 %v1002, %v1079
    %v1088 = vadd.f32 %v1003, %v1080
    %v1089 = vadd.f32 %v1004, %v1081
    %v1090 = vadd.f32 %v1005, %v1082
    %v1091 = vstv %s211
    %v1092 = vadd.f32 %v1066, %v1091
    %v1093 = vadd.f32 %v1067, %v1091
    %v1094 = vadd.f32 %v1068, %v1091
    %v1095 = vadd.f32 %v1069, %v1091
    %v1096 = vadd.f32 %v1070, %v1091
    %v1097 = vadd.f32 %v1071, %v1091
    %v1098 = vadd.f32 %v1072, %v1091
    %v1099 = vadd.f32 %v1073, %v1091
    %v1100 = vstv %s212
    %v1101 = vadd.f32 %v1083, %v1100
    %v1102 = vadd.f32 %v1084, %v1100
    %v1103 = vadd.f32 %v1085, %v1100
    %v1104 = vadd.f32 %v1086, %v1100
    %v1105 = vadd.f32 %v1087, %v1100
    %v1106 = vadd.f32 %v1088, %v1100
    %v1107 = vadd.f32 %v1089, %v1100
    %v1108 = vadd.f32 %v1090, %v1100
    %v1109 = vsel %vm165, %v1092, %v1101
    %v1110 = vsel %vm165, %v1093, %v1102
    %v1111 = vsel %vm165, %v1094, %v1103
    %v1112 = vsel %vm165, %v1095, %v1104
    %v1113 = vsel %vm165, %v1096, %v1105
    %v1114 = vsel %vm165, %v1097, %v1106
    %v1115 = vsel %vm165, %v1098, %v1107
    %v1116 = vsel %vm165, %v1099, %v1108
    %1117 = vst [vmem:[#allocation12] sm:$0xff] %v1109
    %1118 = vst [vmem:[#allocation12 + $0x8] sm:$0xff] %v1110
    %1119 = vst [vmem:[#allocation12 + $0x10] sm:$0xff] %v1111
    %1120 = vst [vmem:[#allocation12 + $0x18] sm:$0xff] %v1112
    %1121 = vst [vmem:[#allocation12 + $0x20] sm:$0xff] %v1113
    %1122 = vst [vmem:[#allocation12 + $0x28] sm:$0xff] %v1114
    %1123 = vst [vmem:[#allocation12 + $0x30] sm:$0xff] %v1115
    %1124 = vst [vmem:[#allocation12 + $0x38] sm:$0xff] %v1116
    // Predicated region
    $region42: #{tpu_custom_call.1} parent=1 // pred_check
      _
    $region43: #{tpu_custom_call.1} parent=1 // pred_check_branch
      %1126 = sbr.rel (0) target = $region45
    $region44: #{tpu_custom_call.1} parent=1 // pred_region
      %s1128 = ssub.s32 1024, 1024
      %1129 = vsyncadd [#allocation4], %s1128
      %s1130 = sshll.u32 [#allocation12], 4
      %s1131 = int_to_ptr.vmem [resolvable:$true] %s1130
      %1136 = dma.vmem_to_hbm [thread:$0]  %s1131, 1024, %s5, [#allocation4], 128, 128, 8
    $region45: #{tpu_custom_call.1} parent=1 // pred_fallthru
      _
    // Predicated region
    $region46: #{tpu_custom_call.1} parent=1 // pred_check
      _
    $region47: #{tpu_custom_call.1} parent=1 // pred_check_branch
      %1138 = sbr.rel (0) target = $region49
    $region48: #{tpu_custom_call.1} parent=1 // pred_region
      %1139 = dma.done [#allocation4], 1024
    $region49: #{tpu_custom_call.1} parent=1 // pred_fallthru
      _
    %1140 = vsyncpa [#allocation3], 1
    %1141 = vsyncpa [#allocation4], 1
    %1142 = vsyncpa [#allocation5], 1
    %1143 = vsyncpa [#allocation8], 1
    %1144 = vsyncpa [#allocation11], 1

</llo_original>
